<compile_context>
chip_gen: v7x
topology: tpu7x:2x2x1
jax: 0.10.0
libtpu: 0.0.40
codegen_flags: <defaults>
</compile_context>

<pallas_src>
import jax
import jax.numpy as jnp
import numpy as np
from jax.experimental import pallas as pl
from jax.experimental.pallas import tpu as pltpu

_LANE = 128
_TILE_ROWS = 8192                      # 8192*128*4B = 4 MiB per f32 tile
_SMALL_SLAB_BYTES = 2 * 1024 * 1024    # whole-slab (no-grid) path threshold
_VMEM_LIMIT = 32 * 1024 * 1024         # safe on v7x (64 MiB phys), explicit on v5e/v6e


def _copy_kernel(x_ref, o_ref):
    # Empty forward ⇒ identity: straight VMEM copy of the current block.
    o_ref[...] = x_ref[...]


def _encoder_forward(x: jax.Array) -> jax.Array:
    """Pallas 'forward' for the empty Encoder module: identity pass-through."""
    orig_shape = x.shape
    total = x.size
    nbytes = total * x.dtype.itemsize

    # Lane-dense 2D layout.
    if total % _LANE == 0:
        rows, cols = total // _LANE, _LANE
    else:
        # Lane-dense fallback: full-extent trailing dim (1, total) keeps the
        # stores unmasked (no vst.msk from a narrow trailing dim); this shape
        # always takes the whole-slab path below.
        # TODO(synk): very large non-128-divisible inputs would need a padded
        #             tiled path; not needed for this module's usage.
        rows, cols = 1, total
    x2d = x.reshape(rows, cols)

    use_whole_slab = (nbytes <= _SMALL_SLAB_BYTES) or (cols != _LANE)

    if use_whole_slab:
        # Small input: single invocation, no grid loop, whole slab in VMEM,
        # output aliased to the (donated) input buffer.
        out2d = pl.pallas_call(
            _copy_kernel,
            out_shape=jax.ShapeDtypeStruct((rows, cols), x2d.dtype),
            in_specs=[pl.BlockSpec(memory_space=pltpu.MemorySpace.VMEM)],
            out_specs=pl.BlockSpec(memory_space=pltpu.MemorySpace.VMEM),
            input_output_aliases={0: 0},
            compiler_params=pltpu.CompilerParams(
                vmem_limit_bytes=_VMEM_LIMIT,
            ),
        )(x2d)
    else:
        # Pipelined tiled path: 4 MiB lane-dense tiles, double-buffered in+out
        # (~16 MiB live), parallel grid (shards across both TCs on v7x).
        out2d = pl.pallas_call(
            _copy_kernel,
            out_shape=jax.ShapeDtypeStruct((rows, cols), x2d.dtype),
            grid=(pl.cdiv(rows, _TILE_ROWS),),
            in_specs=[pl.BlockSpec((_TILE_ROWS, cols), lambda i: (i, 0))],
            out_specs=pl.BlockSpec((_TILE_ROWS, cols), lambda i: (i, 0)),
            input_output_aliases={0: 0},
            compiler_params=pltpu.CompilerParams(
                dimension_semantics=("parallel",),
                vmem_limit_bytes=_VMEM_LIMIT,
            ),
        )(x2d)

    return out2d.reshape(orig_shape)


# Donation makes the input_output_aliases claim real: without donate_argnums,
# XLA inserts a defensive copy of x before the aliased call.
encoder_forward = jax.jit(_encoder_forward, donate_argnums=0)


if __name__ == "__main__":
    key = jax.random.PRNGKey(0)
    # Small NCHW input consistent with a conv/transformer-style encoder.
    x = jax.random.normal(key, (2, 4, 16, 16), dtype=jnp.float32)

    # x is donated to the jitted call — snapshot it on the host first so the
    # correctness check does not read an invalidated device buffer.
    x_host = np.asarray(jax.device_get(x))

    y = encoder_forward(x)
    jax.block_until_ready(y)

    # The empty forward has no computation; the identity kernel must return
    # the input unchanged.
    assert y.shape == x_host.shape and y.dtype == x_host.dtype
    np.testing.assert_array_equal(np.asarray(jax.device_get(y)), x_host)

    print("KERNEL_OK")
</pallas_src>

<mosaic_0001>
module attributes {stable_mosaic.version = 11 : i64} {
  func.func @_copy_kernel(%arg0: memref<16x128xf32, #tpu.memory_space<vmem>>, %arg1: memref<16x128xf32, #tpu.memory_space<vmem>>) attributes {dimension_semantics = [], scalar_prefetch = 0 : i64, scratch_operands = 0 : i64, tpu.core_type = #tpu.core_type<tc>} {
    %c0 = arith.constant 0 : index
    %c0_0 = arith.constant 0 : index
    %0 = vector.load %arg0[%c0, %c0_0] : memref<16x128xf32, #tpu.memory_space<vmem>>, vector<16x128xf32>
    %c0_1 = arith.constant 0 : index
    %c0_2 = arith.constant 0 : index
    %1 = vector.load %arg1[%c0_1, %c0_2] : memref<16x128xf32, #tpu.memory_space<vmem>>, vector<16x128xf32>
    tpu.vector_store %arg1[%c0_1, %c0_2], %0 {strides = array<i32>} : memref<16x128xf32, #tpu.memory_space<vmem>>, vector<16x128xf32>,
    return
  }
}

</mosaic_0001>

<llo_original>
// kernel: _encoder_forward.1
$region0: #{_encoder_forward.1}
  #allocation0 [shape = 'u32[]', space=smem, size = 0x4, offset = 0x4, fixed_abs, tag = 'smem constant byte address 0x4 - core index']
  #allocation1 [shape = 'u32[144,128]{1,0:T(1,128)}', space=vmem, size = 0x12000, scoped, tag = 'internal scratch']
  %s0 = inlined_call_operand.vmem [shape: f32[16,128], index: 0, kind: input, shape index: {}, may-alias: {0,1}]
  %s1 = inlined_call_operand.vmem [shape: f32[16,128], index: 1, kind: output, shape index: {}, may-alias: {0,1}]
  %s2 = sld [smem:[#allocation0]]
  $region14: #{_encoder_forward.1} parent=0
    _
  %s4 = ssub.s32 1, %s2
  %s5 = scalar_select 0, %s4, %s2
  // Predicated region
  $region2: #{_encoder_forward.1} parent=0 // pred_check
    _
  $region3: #{_encoder_forward.1} parent=0 // pred_check_branch
    %7 = sbr.rel (0) target = $region5
  $region4: #{_encoder_forward.1} parent=0 // pred_region
    _
  $region5: #{_encoder_forward.1} parent=0 // pred_fallthru
    _
  %v8 = vld [vmem:[%s0] sm:$0xff]
  %v9 = vld [vmem:[%s0 + $0x8] sm:$0xff]
  %10 = vst [vmem:[%s1] sm:$0xff] %v8
  %11 = vst [vmem:[%s1 + $0x8] sm:$0xff] %v9
  // Predicated region
  $region6: #{_encoder_forward.1} parent=0 // pred_check
    _
  $region7: #{_encoder_forward.1} parent=0 // pred_check_branch
    %13 = sbr.rel (0) target = $region9
  $region8: #{_encoder_forward.1} parent=0 // pred_region
    _
  $region9: #{_encoder_forward.1} parent=0 // pred_fallthru
    _
  // Predicated region
  $region10: #{_encoder_forward.1} parent=0 // pred_check
    _
  $region11: #{_encoder_forward.1} parent=0 // pred_check_branch
    %15 = sbr.rel (0) target = $region13
  $region12: #{_encoder_forward.1} parent=0 // pred_region
    _
  $region13: #{_encoder_forward.1} parent=0 // pred_fallthru
    _

</llo_original>
